<compile_context>
chip_gen: v7x
topology: tpu7x:2x2x1
jax: 0.10.0
libtpu: 0.0.40
codegen_flags: <defaults>
</compile_context>

<pallas_src>
import jax
import jax.numpy as jnp
from jax.experimental import pallas as pl
from jax.experimental.pallas import tpu as pltpu


def _sigmoid_mul_kernel(gate_ref, x_ref, o_ref):
    # gate_ref: (TR, 1), x_ref / o_ref: (TR, TC)
    g = jax.nn.sigmoid(gate_ref[...].astype(jnp.float32))            # (TR, 1)
    o_ref[...] = (x_ref[...].astype(jnp.float32) * g).astype(o_ref.dtype)


def _round_up(x, m):
    return (x + m - 1) // m * m


def sigmoid_mul(x793, x789, *, target_block_bytes=2 * 1024 * 1024):
    """x793: (N, C, 1, 1) gate logits, x789: (N, C, H, W) -> (N, C, H, W)."""
    N, C, H, W = x789.shape
    assert x793.shape == (N, C, 1, 1)

    rows = N * C
    hw = H * W
    x2d = x789.reshape(rows, hw)           # free reshape (contiguous NCHW)
    g2d = x793.reshape(rows, 1)
    dtype_bytes = x789.dtype.itemsize

    # ---- column (lane) tile --------------------------------------------
    # Full extent when it fits comfortably; otherwise a multiple-of-128 tile.
    if hw <= 2048:
        tc = hw
    else:
        tc = 2048
    col_steps = pl.cdiv(hw, tc)

    # ---- row (sublane) tile: ~target_block_bytes per data buffer --------
    lane_bytes = _round_up(tc, 128) * dtype_bytes    # padded VMEM row width
    tr = max(8, target_block_bytes // lane_bytes)
    tr = _round_up(tr, 8)
    tr = min(tr, 4096)                    # bound (tr, 1) gate-block padding
    if rows > 8:
        # Keep >= 2 row steps so v7x megacore gets both TensorCores busy.
        tr = min(tr, _round_up(pl.cdiv(rows, 2), 8))
    if tr >= rows:
        tr = rows                         # single full-extent row block
    row_steps = pl.cdiv(rows, tr)

    cost = pl.CostEstimate(
        flops=2 * rows * hw,
        transcendentals=rows * col_steps,
        bytes_accessed=2 * rows * hw * dtype_bytes + rows * g2d.dtype.itemsize,
    )

    out2d = pl.pallas_call(
        _sigmoid_mul_kernel,
        out_shape=jax.ShapeDtypeStruct((rows, hw), x789.dtype),
        grid_spec=pltpu.PrefetchScalarGridSpec(
            num_scalar_prefetch=0,
            grid=(row_steps, col_steps),
            in_specs=[
                pl.BlockSpec((tr, 1), lambda i, j: (i, 0)),    # per-row gate
                pl.BlockSpec((tr, tc), lambda i, j: (i, j)),   # data tile
            ],
            out_specs=pl.BlockSpec((tr, tc), lambda i, j: (i, j)),
        ),
        compiler_params=pltpu.CompilerParams(
            dimension_semantics=("parallel", "parallel"),
            vmem_limit_bytes=32 * 1024 * 1024,
        ),
        cost_estimate=cost,
    )(g2d, x2d)

    return out2d.reshape(N, C, H, W)


if __name__ == "__main__":
    key = jax.random.PRNGKey(0)

    shapes = [
        (1, 384, 7, 7),     # scaled-down version of the module's (1, 3840, 7, 7)
        (2, 64, 16, 16),    # H*W = 256 -> lane-dense column path
        (1, 100, 7, 7),     # rows not a multiple of the tile -> partial blocks
        (1, 3840, 7, 7),    # exact module shape (still < 1 MiB of data)
    ]

    for idx, (N, C, H, W) in enumerate(shapes):
        k1, k2 = jax.random.split(jax.random.fold_in(key, idx))
        x789 = jax.random.normal(k1, (N, C, H, W), dtype=jnp.float32)
        x793 = jax.random.normal(k2, (N, C, 1, 1), dtype=jnp.float32)

        out = jax.block_until_ready(sigmoid_mul(x793, x789))

        ref = x789 * jax.nn.sigmoid(x793)
        assert out.shape == ref.shape
        assert jnp.allclose(out, ref, atol=1e-6, rtol=1e-6), f"mismatch at {(N, C, H, W)}"

    print("KERNEL_OK")
</pallas_src>

<mosaic_0001>
module attributes {stable_mosaic.version = 11 : i64} {
  func.func @_sigmoid_mul_kernel(%arg0: i32, %arg1: i32, %arg2: memref<192x1xf32, #tpu.memory_space<vmem>>, %arg3: memref<192x49xf32, #tpu.memory_space<vmem>>, %arg4: memref<192x49xf32, #tpu.memory_space<vmem>>) attributes {dimension_semantics = [#tpu.dimension_semantics<parallel>, #tpu.dimension_semantics<parallel>], iteration_bounds = array<i64: 2, 1>, scalar_prefetch = 0 : i64, scratch_operands = 0 : i64, tpu.core_type = #tpu.core_type<tc>, window_params = [{transform_indices = @transform_0, window_bounds = array<i64: 192, 1>}, {transform_indices = @transform_1, window_bounds = array<i64: 192, 49>}, {transform_indices = @transform_2, window_bounds = array<i64: 192, 49>}]} {
    %c0 = arith.constant 0 : index
    %c0_0 = arith.constant 0 : index
    %0 = vector.load %arg2[%c0, %c0_0] : memref<192x1xf32, #tpu.memory_space<vmem>>, vector<192x1xf32>
    %1 = arith.negf %0 : vector<192x1xf32>
    %2 = math.exp %1 : vector<192x1xf32>
    %cst = arith.constant 1.000000e+00 : f32
    %3 = vector.broadcast %cst : f32 to vector<192x1xf32>
    %4 = arith.addf %3, %2 : vector<192x1xf32>
    %5 = arith.divf %3, %4 : vector<192x1xf32>
    %c0_1 = arith.constant 0 : index
    %c0_2 = arith.constant 0 : index
    %6 = vector.load %arg3[%c0_1, %c0_2] : memref<192x49xf32, #tpu.memory_space<vmem>>, vector<192x49xf32>
    %7 = vector.broadcast %5 : vector<192x1xf32> to vector<192x49xf32>
    %8 = arith.mulf %6, %7 : vector<192x49xf32>
    %c0_3 = arith.constant 0 : index
    %c0_4 = arith.constant 0 : index
    %9 = vector.load %arg4[%c0_3, %c0_4] : memref<192x49xf32, #tpu.memory_space<vmem>>, vector<192x49xf32>
    tpu.vector_store %arg4[%c0_3, %c0_4], %8 {strides = array<i32>} : memref<192x49xf32, #tpu.memory_space<vmem>>, vector<192x49xf32>,
    return
  }
  func.func @transform_0(%arg0: i32, %arg1: i32) -> (i32, i32) {
    %c0_i32 = arith.constant 0 : i32
    %c0_i32_0 = arith.constant 0 : i32
    return %arg0, %c0_i32 : i32, i32
  }
  func.func @transform_1(%arg0: i32, %arg1: i32) -> (i32, i32) {
    %c0_i32 = arith.constant 0 : i32
    return %arg0, %arg1 : i32, i32
  }
  func.func @transform_2(%arg0: i32, %arg1: i32) -> (i32, i32) {
    %c0_i32 = arith.constant 0 : i32
    return %arg0, %arg1 : i32, i32
  }
}

</mosaic_0001>

<llo_original>
// kernel: tpu_custom_call.1
$region0: #{tpu_custom_call.1}
  #allocation0 [shape = 'u32[]', space=smem, size = 0x4, offset = 0x4, fixed_abs, tag = 'smem constant byte address 0x4 - core index']
  #allocation1 [shape = 'u32[144,128]{1,0:T(1,128)}', space=vmem, size = 0x12000, scoped, tag = 'internal scratch']
  %s0 = inlined_call_operand.vmem [shape: f32[384,1], index: 0, kind: input, shape index: {}]
  %s1 = inlined_call_operand.vmem [shape: f32[384,49], index: 1, kind: input, shape index: {}]
  %s2 = inlined_call_operand.vmem [shape: f32[384,49], index: 2, kind: output, shape index: {}]
  %s3 = sld [smem:[#allocation0]]
  $region41: #{tpu_custom_call.1} parent=0
    _
  %s5 = ssub.s32 1, %s3
  %s6 = scalar_select 0, %s5, %s3
  loop: start=0, step=1, limit=4
  $region2: #{tpu_custom_call.1} parent=0 // loop_pre_header
    _
  $region3: #{tpu_custom_call.1} parent=0 // loop_header
    %s8 = sphi 0, %s12
    %p9 = scmp.ge.s32.totalorder %s8, 4
    %s15 = sphi 0, %s27
    %s16 = sphi 0, %s23
    %s17 = sphi 0, %s15
    %s18 = sphi 0, %s16
    %s19 = sphi 0, %s17
    %s20 = sphi 0, %s18
    %s30 = sphi 0, %s32
    %s33 = sphi 0, %s30
    %s34 = sphi 0, %s33
    %s50 = sphi 0, %s34
    %s58 = sphi 0, %s60
    %s61 = sphi 0, %s58
    %s62 = sphi 0, %s61
    %s78 = sphi 0, %s62
    %s86 = sphi 0, %s88
    %s89 = sphi 0, %s86
    %s90 = sphi 0, %s89
    %s106 = sphi 0, %s90
  $region4: #{tpu_custom_call.1} parent=0 // loop_header_branch
    %11 = sbr.rel (%p9) target = $region8
  $region5: #{tpu_custom_call.1} parent=0 // loop_body
    %s13 = ssub.s32 %s8, 1
    %s14 = ssub.s32 %s8, 2
    %s21 = sadd.s32 1, %s16
    %p22 = scmp.ge.s32.totalorder %s21, 1
    %s23 = scalar_select %p22, 0, %s21
    %s24 = sadd.s32 1, %s15
    %s25 = scalar_select %p22, %s24, %s15
    %p26 = scmp.ge.s32.totalorder %s25, 2
    %s27 = scalar_select %p26, 0, %s25
    %s28 = ssub.s32 %s15, %s27
    %p29 = scmp.eq.s32.totalorder %s28, 0
    %s31 = sadd.s32 %s30, 1
    %s32 = scalar_select %p29, %s30, %s31
    %p35 = pneg %p29
    %p36 = scmp.eq.s32.totalorder %s8, 1
    %p37 = por %p35, %p36
    %p38 = scmp.ne.s32.totalorder %s30, %s33
    %p39 = scmp.eq.s32.totalorder %s8, 0
    %p40 = por %p38, %p39
    %p41 = scmp.ne.s32.totalorder %s30, %s33
    %p42 = scmp.eq.s32.totalorder %s13, 1
    %p43 = por %p41, %p42
    %p44 = scmp.ne.s32.totalorder %s33, %s34
    %p45 = scmp.eq.s32.totalorder %s13, 0
    %p46 = por %p44, %p45
    %p47 = scmp.ne.s32.totalorder %s33, %s34
    %p48 = scmp.eq.s32.totalorder %s14, 1
    %p49 = por %p47, %p48
    %p51 = scmp.ne.s32.totalorder %s34, %s50
    %p52 = scmp.eq.s32.totalorder %s14, 0
    %p53 = por %p51, %p52
    %s54 = ssub.s32 %s15, %s27
    %s55 = ssub.s32 %s16, %s23
    %s56 = sor.u32 %s54, %s55
    %p57 = scmp.eq.s32.totalorder %s56, 0
    %s59 = sadd.s32 %s58, 1
    %s60 = scalar_select %p57, %s58, %s59
    %p63 = pneg %p57
    %p64 = scmp.eq.s32.totalorder %s8, 1
    %p65 = por %p63, %p64
    %p66 = scmp.ne.s32.totalorder %s58, %s61
    %p67 = scmp.eq.s32.totalorder %s8, 0
    %p68 = por %p66, %p67
    %p69 = scmp.ne.s32.totalorder %s58, %s61
    %p70 = scmp.eq.s32.totalorder %s13, 1
    %p71 = por %p69, %p70
    %p72 = scmp.ne.s32.totalorder %s61, %s62
    %p73 = scmp.eq.s32.totalorder %s13, 0
    %p74 = por %p72, %p73
    %p75 = scmp.ne.s32.totalorder %s61, %s62
    %p76 = scmp.eq.s32.totalorder %s14, 1
    %p77 = por %p75, %p76
    %p79 = scmp.ne.s32.totalorder %s62, %s78
    %p80 = scmp.eq.s32.totalorder %s14, 0
    %p81 = por %p79, %p80
    %s82 = ssub.s32 %s15, %s27
    %s83 = ssub.s32 %s16, %s23
    %s84 = sor.u32 %s82, %s83
    %p85 = scmp.eq.s32.totalorder %s84, 0
    %s87 = sadd.s32 %s86, 1
    %s88 = scalar_select %p85, %s86, %s87
    %p91 = pneg %p85
    %p92 = scmp.eq.s32.totalorder %s8, 1
    %p93 = por %p91, %p92
    %p94 = scmp.ne.s32.totalorder %s86, %s89
    %p95 = scmp.eq.s32.totalorder %s8, 0
    %p96 = por %p94, %p95
    %p97 = scmp.ne.s32.totalorder %s86, %s89
    %p98 = scmp.eq.s32.totalorder %s13, 1
    %p99 = por %p97, %p98
    %p100 = scmp.ne.s32.totalorder %s89, %s90
    %p101 = scmp.eq.s32.totalorder %s13, 0
    %p102 = por %p100, %p101
    %p103 = scmp.ne.s32.totalorder %s89, %s90
    %p104 = scmp.eq.s32.totalorder %s14, 1
    %p105 = por %p103, %p104
    %p107 = scmp.ne.s32.totalorder %s90, %s106
    %p108 = scmp.eq.s32.totalorder %s14, 0
    %p109 = por %p107, %p108
    %p110 = scmp.le.s32.totalorder 1, %s8
    %p111 = scmp.lt.s32.totalorder %s8, 3
    %p112 = pnand %p110, %p111
    %p113 = pneg %p112
    // Predicated region
    $region9: #{tpu_custom_call.1} parent=5 // pred_check
      _
    $region10: #{tpu_custom_call.1} parent=5 // pred_check_branch
      %115 = sbr.rel (%p112) target = $region12
    $region11: #{tpu_custom_call.1} parent=5 // pred_region
      %s116 = ssub.s32 %s8, 1
    $region12: #{tpu_custom_call.1} parent=5 // pred_fallthru
      _
    %p117 = scmp.lt.s32.totalorder %s8, 2
    // Predicated region
    $region13: #{tpu_custom_call.1} parent=5 // pred_check
      %p118 = pneg %p117
    $region14: #{tpu_custom_call.1} parent=5 // pred_check_branch
      %120 = sbr.rel (%p118) target = $region16
    $region15: #{tpu_custom_call.1} parent=5 // pred_region
      // Predicated region
      $region17: #{tpu_custom_call.1} parent=15 // pred_check
        %p121 = pneg %p40
      $region18: #{tpu_custom_call.1} parent=15 // pred_check_branch
        %123 = sbr.rel (%p121) target = $region20
      $region19: #{tpu_custom_call.1} parent=15 // pred_region
        %s124 = smul.u32 24, %s15
        %p125 = scmp.lt.s32.totalorder %s124, 47
        %s126 = scalar_select %p125, %s124, 47
        %s127 = smul.addr %s126, 8
        %s128 = scalar_lea.vmem %s0, %s127
        %s129 = smul.u32 24, %s15
      $region20: #{tpu_custom_call.1} parent=15 // pred_fallthru
        _
      // Predicated region
      $region21: #{tpu_custom_call.1} parent=15 // pred_check
        %p130 = pneg %p68
      $region22: #{tpu_custom_call.1} parent=15 // pred_check_branch
        %132 = sbr.rel (%p130) target = $region24
      $region23: #{tpu_custom_call.1} parent=15 // pred_region
        %s133 = smul.u32 24, %s15
        %p134 = scmp.lt.s32.totalorder %s133, 47
        %s135 = scalar_select %p134, %s133, 47
        %p136 = scmp.lt.s32.totalorder %s16, 0
        %s137 = scalar_select %p136, %s16, 0
        %s138 = sadd.s32 %s137, %s135
        %s139 = smul.addr %s138, 8
        %s140 = scalar_lea.vmem %s1, %s139
        %s141 = smul.u32 24, %s15
      $region24: #{tpu_custom_call.1} parent=15 // pred_fallthru
        _
    $region16: #{tpu_custom_call.1} parent=5 // pred_fallthru
      _
    %p142 = scmp.le.s32.totalorder 1, %s8
    %p143 = scmp.lt.s32.totalorder %s8, 3
    %p144 = pnand %p142, %p143
    %p145 = pneg %p144
    // Predicated region
    $region25: #{tpu_custom_call.1} parent=5 // pred_check
      _
    $region26: #{tpu_custom_call.1} parent=5 // pred_check_branch
      %147 = sbr.rel (%p144) target = $region28
    $region27: #{tpu_custom_call.1} parent=5 // pred_region
      %s148 = ssub.s32 %s8, 1
      %s149 = smul.u32 24, %s17
      %p150 = scmp.lt.s32.totalorder %s149, 47
      %s151 = scalar_select %p150, %s149, 47
      %s152 = smul.addr %s151, 8
      %s153 = scalar_lea.vmem %s0, %s152
      %p154 = pneg %p46
      %p155 = pneg %p43
      %s156 = smul.u32 24, %s17
      %p157 = scmp.lt.s32.totalorder %s156, 47
      %s158 = scalar_select %p157, %s156, 47
      %p159 = scmp.lt.s32.totalorder %s18, 0
      %s160 = scalar_select %p159, %s18, 0
      %s161 = sadd.s32 %s160, %s158
      %s162 = smul.addr %s161, 8
      %s163 = scalar_lea.vmem %s1, %s162
      %p164 = pneg %p74
      %p165 = pneg %p71
      %p166 = pneg %p102
      %p167 = pneg %p99
      %s168 = smul.u32 24, %s17
      %p169 = scmp.lt.s32.totalorder %s168, 47
      %s170 = scalar_select %p169, %s168, 47
      %p171 = scmp.lt.s32.totalorder %s18, 0
      %s172 = scalar_select %p171, %s18, 0
      %s173 = sadd.s32 %s172, %s170
      %s174 = smul.addr %s173, 8
      %s175 = scalar_lea.vmem %s2, %s174
      %s176 = smul.u32 24, %s17
      %p177 = scmp.lt.s32.totalorder %s176, 47
      %s178 = scalar_select %p177, %s176, 47
      %s179 = smul.addr %s178, 8
      %s180 = scalar_lea.vmem %s0, %s179
      %s181 = smul.u32 24, %s17
      %s182 = smul.u32 24, %s17
      %p183 = scmp.lt.s32.totalorder %s182, 47
      %s184 = scalar_select %p183, %s182, 47
      %p185 = scmp.lt.s32.totalorder %s18, 0
      %s186 = scalar_select %p185, %s18, 0
      %s187 = sadd.s32 %s186, %s184
      %s188 = smul.addr %s187, 8
      %s189 = scalar_lea.vmem %s1, %s188
      %s190 = smul.u32 24, %s17
      %s191 = smul.u32 24, %s17
      %p192 = scmp.lt.s32.totalorder %s191, 47
      %s193 = scalar_select %p192, %s191, 47
      %p194 = scmp.lt.s32.totalorder %s18, 0
      %s195 = scalar_select %p194, %s18, 0
      %s196 = sadd.s32 %s195, %s193
      %s197 = smul.addr %s196, 8
      %s198 = scalar_lea.vmem %s2, %s197
      %s199 = smul.u32 24, %s17
      %v200 = vld [vmem:[%s180] sm:$0xff]
      %v201 = vld [vmem:[%s180 + $0x8] sm:$0xff]
      %v202 = vld [vmem:[%s180 + $0x10] sm:$0xff]
      %v203 = vld [vmem:[%s180 + $0x18] sm:$0xff]
      %v204 = vld [vmem:[%s180 + $0x20] sm:$0xff]
      %v205 = vld [vmem:[%s180 + $0x28] sm:$0xff]
      %v206 = vld [vmem:[%s180 + $0x30] sm:$0xff]
      %v207 = vld [vmem:[%s180 + $0x38] sm:$0xff]
      %v208 = vld [vmem:[%s180 + $0x40] sm:$0xff]
      %v209 = vld [vmem:[%s180 + $0x48] sm:$0xff]
      %v210 = vld [vmem:[%s180 + $0x50] sm:$0xff]
      %v211 = vld [vmem:[%s180 + $0x58] sm:$0xff]
      %v212 = vld [vmem:[%s180 + $0x60] sm:$0xff]
      %v213 = vld [vmem:[%s180 + $0x68] sm:$0xff]
      %v214 = vld [vmem:[%s180 + $0x70] sm:$0xff]
      %v215 = vld [vmem:[%s180 + $0x78] sm:$0xff]
      %v216 = vld [vmem:[%s180 + $0x80] sm:$0xff]
      %v217 = vld [vmem:[%s180 + $0x88] sm:$0xff]
      %v218 = vld [vmem:[%s180 + $0x90] sm:$0xff]
      %v219 = vld [vmem:[%s180 + $0x98] sm:$0xff]
      %v220 = vld [vmem:[%s180 + $0xa0] sm:$0xff]
      %v221 = vld [vmem:[%s180 + $0xa8] sm:$0xff]
      %v222 = vld [vmem:[%s180 + $0xb0] sm:$0xff]
      %v223 = vld [vmem:[%s180 + $0xb8] sm:$0xff]
      %v224 = vxor.u32 %v200, 2147483648
      %v225 = vxor.u32 %v201, 2147483648
      %v226 = vxor.u32 %v202, 2147483648
      %v227 = vxor.u32 %v203, 2147483648
      %v228 = vxor.u32 %v204, 2147483648
      %v229 = vxor.u32 %v205, 2147483648
      %v230 = vxor.u32 %v206, 2147483648
      %v231 = vxor.u32 %v207, 2147483648
      %v232 = vxor.u32 %v208, 2147483648
      %v233 = vxor.u32 %v209, 2147483648
      %v234 = vxor.u32 %v210, 2147483648
      %v235 = vxor.u32 %v211, 2147483648
      %v236 = vxor.u32 %v212, 2147483648
      %v237 = vxor.u32 %v213, 2147483648
      %v238 = vxor.u32 %v214, 2147483648
      %v239 = vxor.u32 %v215, 2147483648
      %v240 = vxor.u32 %v216, 2147483648
      %v241 = vxor.u32 %v217, 2147483648
      %v242 = vxor.u32 %v218, 2147483648
      %v243 = vxor.u32 %v219, 2147483648
      %v244 = vxor.u32 %v220, 2147483648
      %v245 = vxor.u32 %v221, 2147483648
      %v246 = vxor.u32 %v222, 2147483648
      %v247 = vxor.u32 %v223, 2147483648
      %v248 = vmul.f32 %v224, 1.442695
      %v249 = vpow.pop %v248
      %v250 = vmul.f32 %v225, 1.442695
      %v251 = vpow.pop %v250
      %v252 = vmul.f32 %v226, 1.442695
      %v253 = vpow.pop %v252
      %v254 = vmul.f32 %v227, 1.442695
      %v255 = vpow.pop %v254
      %v256 = vmul.f32 %v228, 1.442695
      %v257 = vpow.pop %v256
      %v258 = vmul.f32 %v229, 1.442695
      %v259 = vpow.pop %v258
      %v260 = vmul.f32 %v230, 1.442695
      %v261 = vpow.pop %v260
      %v262 = vmul.f32 %v231, 1.442695
      %v263 = vpow.pop %v262
      %v264 = vmul.f32 %v232, 1.442695
      %v265 = vpow.pop %v264
      %v266 = vmul.f32 %v233, 1.442695
      %v267 = vpow.pop %v266
      %v268 = vmul.f32 %v234, 1.442695
      %v269 = vpow.pop %v268
      %v270 = vmul.f32 %v235, 1.442695
      %v271 = vpow.pop %v270
      %v272 = vmul.f32 %v236, 1.442695
      %v273 = vpow.pop %v272
      %v274 = vmul.f32 %v237, 1.442695
      %v275 = vpow.pop %v274
      %v276 = vmul.f32 %v238, 1.442695
      %v277 = vpow.pop %v276
      %v278 = vmul.f32 %v239, 1.442695
      %v279 = vpow.pop %v278
      %v280 = vmul.f32 %v240, 1.442695
      %v281 = vpow.pop %v280
      %v282 = vmul.f32 %v241, 1.442695
      %v283 = vpow.pop %v282
      %v284 = vmul.f32 %v242, 1.442695
      %v285 = vpow.pop %v284
      %v286 = vmul.f32 %v243, 1.442695
      %v287 = vpow.pop %v286
      %v288 = vmul.f32 %v244, 1.442695
      %v289 = vpow.pop %v288
      %v290 = vmul.f32 %v245, 1.442695
      %v291 = vpow.pop %v290
      %v292 = vmul.f32 %v246, 1.442695
      %v293 = vpow.pop %v292
      %v294 = vmul.f32 %v247, 1.442695
      %v295 = vpow.pop %v294
      %v296 = vadd.f32 %v249, 1.0
      %v297 = vadd.f32 %v251, 1.0
      %v298 = vadd.f32 %v253, 1.0
      %v299 = vadd.f32 %v255, 1.0
      %v300 = vadd.f32 %v257, 1.0
      %v301 = vadd.f32 %v259, 1.0
      %v302 = vadd.f32 %v261, 1.0
      %v303 = vadd.f32 %v263, 1.0
      %v304 = vadd.f32 %v265, 1.0
      %v305 = vadd.f32 %v267, 1.0
      %v306 = vadd.f32 %v269, 1.0
      %v307 = vadd.f32 %v271, 1.0
      %v308 = vadd.f32 %v273, 1.0
      %v309 = vadd.f32 %v275, 1.0
      %v310 = vadd.f32 %v277, 1.0
      %v311 = vadd.f32 %v279, 1.0
      %v312 = vadd.f32 %v281, 1.0
      %v313 = vadd.f32 %v283, 1.0
      %v314 = vadd.f32 %v285, 1.0
      %v315 = vadd.f32 %v287, 1.0
      %v316 = vadd.f32 %v289, 1.0
      %v317 = vadd.f32 %v291, 1.0
      %v318 = vadd.f32 %v293, 1.0
      %v319 = vadd.f32 %v295, 1.0
      %v320 = vrcp.pop %v296
      %v321 = vmul.f32 1.0, %v320
      %v322 = vrcp.pop %v297
      %v323 = vmul.f32 1.0, %v322
      %v324 = vrcp.pop %v298
      %v325 = vmul.f32 1.0, %v324
      %v326 = vrcp.pop %v299
      %v327 = vmul.f32 1.0, %v326
      %v328 = vrcp.pop %v300
      %v329 = vmul.f32 1.0, %v328
      %v330 = vrcp.pop %v301
      %v331 = vmul.f32 1.0, %v330
      %v332 = vrcp.pop %v302
      %v333 = vmul.f32 1.0, %v332
      %v334 = vrcp.pop %v303
      %v335 = vmul.f32 1.0, %v334
      %v336 = vrcp.pop %v304
      %v337 = vmul.f32 1.0, %v336
      %v338 = vrcp.pop %v305
      %v339 = vmul.f32 1.0, %v338
      %v340 = vrcp.pop %v306
      %v341 = vmul.f32 1.0, %v340
      %v342 = vrcp.pop %v307
      %v343 = vmul.f32 1.0, %v342
      %v344 = vrcp.pop %v308
      %v345 = vmul.f32 1.0, %v344
      %v346 = vrcp.pop %v309
      %v347 = vmul.f32 1.0, %v346
      %v348 = vrcp.pop %v310
      %v349 = vmul.f32 1.0, %v348
      %v350 = vrcp.pop %v311
      %v351 = vmul.f32 1.0, %v350
      %v352 = vrcp.pop %v312
      %v353 = vmul.f32 1.0, %v352
      %v354 = vrcp.pop %v313
      %v355 = vmul.f32 1.0, %v354
      %v356 = vrcp.pop %v314
      %v357 = vmul.f32 1.0, %v356
      %v358 = vrcp.pop %v315
      %v359 = vmul.f32 1.0, %v358
      %v360 = vrcp.pop %v316
      %v361 = vmul.f32 1.0, %v360
      %v362 = vrcp.pop %v317
      %v363 = vmul.f32 1.0, %v362
      %v364 = vrcp.pop %v318
      %v365 = vmul.f32 1.0, %v364
      %v366 = vrcp.pop %v319
      %v367 = vmul.f32 1.0, %v366
      %v368 = vld [vmem:[%s189] sm:$0xff]
      %v369 = vld [vmem:[%s189 + $0x8] sm:$0xff]
      %v370 = vld [vmem:[%s189 + $0x10] sm:$0xff]
      %v371 = vld [vmem:[%s189 + $0x18] sm:$0xff]
      %v372 = vld [vmem:[%s189 + $0x20] sm:$0xff]
      %v373 = vld [vmem:[%s189 + $0x28] sm:$0xff]
      %v374 = vld [vmem:[%s189 + $0x30] sm:$0xff]
      %v375 = vld [vmem:[%s189 + $0x38] sm:$0xff]
      %v376 = vld [vmem:[%s189 + $0x40] sm:$0xff]
      %v377 = vld [vmem:[%s189 + $0x48] sm:$0xff]
      %v378 = vld [vmem:[%s189 + $0x50] sm:$0xff]
      %v379 = vld [vmem:[%s189 + $0x58] sm:$0xff]
      %v380 = vld [vmem:[%s189 + $0x60] sm:$0xff]
      %v381 = vld [vmem:[%s189 + $0x68] sm:$0xff]
      %v382 = vld [vmem:[%s189 + $0x70] sm:$0xff]
      %v383 = vld [vmem:[%s189 + $0x78] sm:$0xff]
      %v384 = vld [vmem:[%s189 + $0x80] sm:$0xff]
      %v385 = vld [vmem:[%s189 + $0x88] sm:$0xff]
      %v386 = vld [vmem:[%s189 + $0x90] sm:$0xff]
      %v387 = vld [vmem:[%s189 + $0x98] sm:$0xff]
      %v388 = vld [vmem:[%s189 + $0xa0] sm:$0xff]
      %v389 = vld [vmem:[%s189 + $0xa8] sm:$0xff]
      %v390 = vld [vmem:[%s189 + $0xb0] sm:$0xff]
      %v391 = vld [vmem:[%s189 + $0xb8] sm:$0xff]
      %393 = vset.pattern.permute.xlu0 0
      %394 = vperm.xlu0 %393, %v321
      %v395 = vpop.permute.xlu0 %394
      %398 = vset.pattern.permute.xlu0 0
      %399 = vperm.xlu0 %398, %v323
      %v400 = vpop.permute.xlu0 %399
      %403 = vset.pattern.permute.xlu0 0
      %404 = vperm.xlu0 %403, %v325
      %v405 = vpop.permute.xlu0 %404
      %408 = vset.pattern.permute.xlu0 0
      %409 = vperm.xlu0 %408, %v327
      %v410 = vpop.permute.xlu0 %409
      %413 = vset.pattern.permute.xlu0 0
      %414 = vperm.xlu0 %413, %v329
      %v415 = vpop.permute.xlu0 %414
      %418 = vset.pattern.permute.xlu0 0
      %419 = vperm.xlu0 %418, %v331
      %v420 = vpop.permute.xlu0 %419
      %423 = vset.pattern.permute.xlu0 0
      %424 = vperm.xlu0 %423, %v333
      %v425 = vpop.permute.xlu0 %424
      %428 = vset.pattern.permute.xlu0 0
      %429 = vperm.xlu0 %428, %v335
      %v430 = vpop.permute.xlu0 %429
      %433 = vset.pattern.permute.xlu0 0
      %434 = vperm.xlu0 %433, %v337
      %v435 = vpop.permute.xlu0 %434
      %438 = vset.pattern.permute.xlu0 0
      %439 = vperm.xlu0 %438, %v339
      %v440 = vpop.permute.xlu0 %439
      %443 = vset.pattern.permute.xlu0 0
      %444 = vperm.xlu0 %443, %v341
      %v445 = vpop.permute.xlu0 %444
      %448 = vset.pattern.permute.xlu0 0
      %449 = vperm.xlu0 %448, %v343
      %v450 = vpop.permute.xlu0 %449
      %453 = vset.pattern.permute.xlu0 0
      %454 = vperm.xlu0 %453, %v345
      %v455 = vpop.permute.xlu0 %454
      %458 = vset.pattern.permute.xlu0 0
      %459 = vperm.xlu0 %458, %v347
      %v460 = vpop.permute.xlu0 %459
      %463 = vset.pattern.permute.xlu0 0
      %464 = vperm.xlu0 %463, %v349
      %v465 = vpop.permute.xlu0 %464
      %468 = vset.pattern.permute.xlu0 0
      %469 = vperm.xlu0 %468, %v351
      %v470 = vpop.permute.xlu0 %469
      %473 = vset.pattern.permute.xlu0 0
      %474 = vperm.xlu0 %473, %v353
      %v475 = vpop.permute.xlu0 %474
      %478 = vset.pattern.permute.xlu0 0
      %479 = vperm.xlu0 %478, %v355
      %v480 = vpop.permute.xlu0 %479
      %483 = vset.pattern.permute.xlu0 0
      %484 = vperm.xlu0 %483, %v357
      %v485 = vpop.permute.xlu0 %484
      %488 = vset.pattern.permute.xlu0 0
      %489 = vperm.xlu0 %488, %v359
      %v490 = vpop.permute.xlu0 %489
      %493 = vset.pattern.permute.xlu0 0
      %494 = vperm.xlu0 %493, %v361
      %v495 = vpop.permute.xlu0 %494
      %498 = vset.pattern.permute.xlu0 0
      %499 = vperm.xlu0 %498, %v363
      %v500 = vpop.permute.xlu0 %499
      %503 = vset.pattern.permute.xlu0 0
      %504 = vperm.xlu0 %503, %v365
      %v505 = vpop.permute.xlu0 %504
      %508 = vset.pattern.permute.xlu0 0
      %509 = vperm.xlu0 %508, %v367
      %v510 = vpop.permute.xlu0 %509
      %v512 = vmul.f32 %v368, %v395
      %v513 = vmul.f32 %v369, %v400
      %v514 = vmul.f32 %v370, %v405
      %v515 = vmul.f32 %v371, %v410
      %v516 = vmul.f32 %v372, %v415
      %v517 = vmul.f32 %v373, %v420
      %v518 = vmul.f32 %v374, %v425
      %v519 = vmul.f32 %v375, %v430
      %v520 = vmul.f32 %v376, %v435
      %v521 = vmul.f32 %v377, %v440
      %v522 = vmul.f32 %v378, %v445
      %v523 = vmul.f32 %v379, %v450
      %v524 = vmul.f32 %v380, %v455
      %v525 = vmul.f32 %v381, %v460
      %v526 = vmul.f32 %v382, %v465
      %v527 = vmul.f32 %v383, %v470
      %v528 = vmul.f32 %v384, %v475
      %v529 = vmul.f32 %v385, %v480
      %v530 = vmul.f32 %v386, %v485
      %v531 = vmul.f32 %v387, %v490
      %v532 = vmul.f32 %v388, %v495
      %v533 = vmul.f32 %v389, %v500
      %v534 = vmul.f32 %v390, %v505
      %v535 = vmul.f32 %v391, %v510
      %vm536 = vcmask 400384
      %537 = vst.msk [vmem:[%s198] sm:$0xff] %vm536, %v512
      %538 = vst.msk [vmem:[%s198 + $0x8] sm:$0xff] %vm536, %v513
      %539 = vst.msk [vmem:[%s198 + $0x10] sm:$0xff] %vm536, %v514
      %540 = vst.msk [vmem:[%s198 + $0x18] sm:$0xff] %vm536, %v515
      %541 = vst.msk [vmem:[%s198 + $0x20] sm:$0xff] %vm536, %v516
      %542 = vst.msk [vmem:[%s198 + $0x28] sm:$0xff] %vm536, %v517
      %543 = vst.msk [vmem:[%s198 + $0x30] sm:$0xff] %vm536, %v518
      %544 = vst.msk [vmem:[%s198 + $0x38] sm:$0xff] %vm536, %v519
      %545 = vst.msk [vmem:[%s198 + $0x40] sm:$0xff] %vm536, %v520
      %546 = vst.msk [vmem:[%s198 + $0x48] sm:$0xff] %vm536, %v521
      %547 = vst.msk [vmem:[%s198 + $0x50] sm:$0xff] %vm536, %v522
      %548 = vst.msk [vmem:[%s198 + $0x58] sm:$0xff] %vm536, %v523
      %549 = vst.msk [vmem:[%s198 + $0x60] sm:$0xff] %vm536, %v524
      %550 = vst.msk [vmem:[%s198 + $0x68] sm:$0xff] %vm536, %v525
      %551 = vst.msk [vmem:[%s198 + $0x70] sm:$0xff] %vm536, %v526
      %552 = vst.msk [vmem:[%s198 + $0x78] sm:$0xff] %vm536, %v527
      %553 = vst.msk [vmem:[%s198 + $0x80] sm:$0xff] %vm536, %v528
      %554 = vst.msk [vmem:[%s198 + $0x88] sm:$0xff] %vm536, %v529
      %555 = vst.msk [vmem:[%s198 + $0x90] sm:$0xff] %vm536, %v530
      %556 = vst.msk [vmem:[%s198 + $0x98] sm:$0xff] %vm536, %v531
      %557 = vst.msk [vmem:[%s198 + $0xa0] sm:$0xff] %vm536, %v532
      %558 = vst.msk [vmem:[%s198 + $0xa8] sm:$0xff] %vm536, %v533
      %559 = vst.msk [vmem:[%s198 + $0xb0] sm:$0xff] %vm536, %v534
      %560 = vst.msk [vmem:[%s198 + $0xb8] sm:$0xff] %vm536, %v535
      %s561 = smul.u32 24, %s17
      %p562 = scmp.lt.s32.totalorder %s561, 47
      %s563 = scalar_select %p562, %s561, 47
      %p564 = scmp.lt.s32.totalorder %s18, 0
      %s565 = scalar_select %p564, %s18, 0
      %s566 = sadd.s32 %s565, %s563
      %s567 = smul.addr %s566, 8
      %s568 = scalar_lea.vmem %s2, %s567
      // Predicated region
      $region29: #{tpu_custom_call.1} parent=27 // pred_check
        %p569 = pneg %p99
      $region30: #{tpu_custom_call.1} parent=27 // pred_check_branch
        %571 = sbr.rel (%p569) target = $region32
      $region31: #{tpu_custom_call.1} parent=27 // pred_region
        %s572 = smul.u32 24, %s17
      $region32: #{tpu_custom_call.1} parent=27 // pred_fallthru
        _
    $region28: #{tpu_custom_call.1} parent=5 // pred_fallthru
      _
    %p573 = scmp.le.s32.totalorder 2, %s8
    // Predicated region
    $region33: #{tpu_custom_call.1} parent=5 // pred_check
      %p574 = pneg %p573
    $region34: #{tpu_custom_call.1} parent=5 // pred_check_branch
      %576 = sbr.rel (%p574) target = $region36
    $region35: #{tpu_custom_call.1} parent=5 // pred_region
      %s577 = ssub.s32 %s8, 2
      // Predicated region
      $region37: #{tpu_custom_call.1} parent=35 // pred_check
        %p578 = pneg %p105
      $region38: #{tpu_custom_call.1} parent=35 // pred_check_branch
        %580 = sbr.rel (%p578) target = $region40
      $region39: #{tpu_custom_call.1} parent=35 // pred_region
        %s581 = smul.u32 24, %s19
        %p582 = scmp.lt.s32.totalorder %s581, 47
        %s583 = scalar_select %p582, %s581, 47
        %p584 = scmp.lt.s32.totalorder %s20, 0
        %s585 = scalar_select %p584, %s20, 0
        %s586 = sadd.s32 %s585, %s583
        %s587 = smul.addr %s586, 8
        %s588 = scalar_lea.vmem %s2, %s587
      $region40: #{tpu_custom_call.1} parent=35 // pred_fallthru
        _
    $region36: #{tpu_custom_call.1} parent=5 // pred_fallthru
      _
  $region6: #{tpu_custom_call.1} parent=0 // loop_footer
    %s12 = sadd.s32 1, %s8
  $region7: #{tpu_custom_call.1} parent=0 // loop_footer_branch
    %7 = sbr.rel target = $region3
  $region8: #{tpu_custom_call.1} parent=0 // loop_exit
    _

</llo_original>
